<compile_context>
chip_gen: v7x
topology: tpu7x:2x2x1
jax: 0.10.0
libtpu: 0.0.40
codegen_flags: <defaults>
</compile_context>

<pallas_src>
import jax
import jax.numpy as jnp
from jax.experimental import pallas as pl
from jax.experimental.pallas import tpu as pltpu

IN_FEATURES = 28 * 28   # 784
HIDDEN = 100
OUT = 10
HIDDEN_PAD = 128        # hidden padded to lane width
OUT_PAD = 128           # output padded to lane width (lane-dense stores)


def mlp_kernel(x_ref, w1_ref, b1_ref, w2_ref, b2_ref, o_ref):
    # x_ref:  (TB, 784) input dtype   w1_ref: (784, 128) bf16   b1_ref: (1, 128) bf16
    # w2_ref: (128, 128) bf16         b2_ref: (1, 128) bf16     o_ref:  (TB, 128) f32
    # Cast the activation tile on-chip (no extra HBM pass); MXU runs bf16 x bf16 -> f32.
    # TODO(synk): if x ever arrives as uint8 pixels, add the /255 scale here after the cast.
    x = x_ref[...].astype(jnp.bfloat16)

    # linear1: x @ W1t + b1 (f32 accumulation), then ReLU on the VPU.
    h = jnp.dot(x, w1_ref[...], preferred_element_type=jnp.float32) + b1_ref[...]
    h = jnp.maximum(h, 0.0)

    # linear2: h @ W2t + b2 (re-cast h to bf16 for the MXU, accumulate in f32).
    logits = jnp.dot(h.astype(jnp.bfloat16), w2_ref[...],
                     preferred_element_type=jnp.float32) + b2_ref[...]
    o_ref[...] = logits.astype(o_ref.dtype)


def _round_up(n, m):
    return ((n + m - 1) // m) * m


def simple_mlp_forward(x, w1, b1, w2, b2, *, tb=2048):
    """x: (B, 28, 28); w1:(100,784) b1:(100,) w2:(10,100) b2:(10,) -> (B, 10) f32."""
    B = x.shape[0]
    flat = x.reshape(B, IN_FEATURES)   # Flatten(start_dim=1); keep caller dtype (cast in-kernel)

    # Batch tile: multiple of 8 sublanes, capped at `tb`, and small enough that the
    # grid keeps >= 4 steps so the "parallel" batch axis can shard across 2 TCs (v7x).
    TB = min(tb, max(8, _round_up(pl.cdiv(B, 4), 8)))
    grid = (pl.cdiv(B, TB),)  # ragged last block: tail reads garbage, tail writes masked

    # Pre-transpose + zero-pad weights once in the wrapper (numerically neutral: padded
    # hidden rows/cols and padded output cols contribute zero and are sliced off),
    # and cast to bf16 so the MXU gets native bf16 operands (f32 accumulation in-kernel).
    w1t = jnp.pad(w1, ((0, HIDDEN_PAD - HIDDEN), (0, 0))).T.astype(jnp.bfloat16)      # (784, 128)
    b1p = jnp.pad(b1, (0, HIDDEN_PAD - HIDDEN)).reshape(1, HIDDEN_PAD).astype(jnp.bfloat16)
    w2t = jnp.pad(w2, ((0, OUT_PAD - OUT), (0, HIDDEN_PAD - HIDDEN))).T.astype(jnp.bfloat16)  # (128, 128)
    b2p = jnp.pad(b2, (0, OUT_PAD - OUT)).reshape(1, OUT_PAD).astype(jnp.bfloat16)

    out = pl.pallas_call(
        mlp_kernel,
        out_shape=jax.ShapeDtypeStruct((B, OUT_PAD), jnp.float32),
        grid=grid,
        in_specs=[
            pl.BlockSpec((TB, IN_FEATURES), lambda i: (i, 0)),          # x: tiled over batch
            pl.BlockSpec((IN_FEATURES, HIDDEN_PAD), lambda i: (0, 0)),  # w1t: VMEM-resident
            pl.BlockSpec((1, HIDDEN_PAD), lambda i: (0, 0)),            # b1:  VMEM-resident
            pl.BlockSpec((HIDDEN_PAD, OUT_PAD), lambda i: (0, 0)),      # w2t: VMEM-resident
            pl.BlockSpec((1, OUT_PAD), lambda i: (0, 0)),               # b2:  VMEM-resident
        ],
        out_specs=pl.BlockSpec((TB, OUT_PAD), lambda i: (i, 0)),
        compiler_params=pltpu.CompilerParams(
            dimension_semantics=("parallel",),   # shard batch tiles across TCs (v7x)
            vmem_limit_bytes=32 << 20,           # ~17 MiB working set at TB=2048
        ),
    )(flat, w1t, b1p, w2t, b2p)

    # Padded (B, 128) -> (B, 10). (Feedback: skip this slice if downstream accepts padding.)
    return out[:, :OUT]


def init_params(key):
    """Deterministic Kaiming-uniform init matching the PyTorch module's __init__."""
    k1, k2, k3, k4 = jax.random.split(key, 4)
    bound1 = IN_FEATURES ** (-0.5)
    bound2 = HIDDEN ** (-0.5)
    w1 = jax.random.uniform(k1, (HIDDEN, IN_FEATURES), jnp.float32, -bound1, bound1)
    b1 = jax.random.uniform(k2, (HIDDEN,), jnp.float32, -bound1, bound1)
    w2 = jax.random.uniform(k3, (OUT, HIDDEN), jnp.float32, -bound2, bound2)
    b2 = jax.random.uniform(k4, (OUT,), jnp.float32, -bound2, bound2)
    return w1, b1, w2, b2


if __name__ == "__main__":
    key = jax.random.PRNGKey(0)
    k_x, k_p = jax.random.split(key)

    B = 2
    x = jax.random.normal(k_x, (B, 28, 28), jnp.float32)
    w1, b1, w2, b2 = init_params(k_p)

    logits = simple_mlp_forward(x, w1, b1, w2, b2)
    logits = jax.block_until_ready(logits)
    assert logits.shape == (B, OUT)

    flat = x.reshape(B, -1)

    # Reference 1: mirror the kernel's bf16-operand / f32-accumulate math (tight check).
    h_ref = jnp.dot(flat.astype(jnp.bfloat16), w1.T.astype(jnp.bfloat16),
                    preferred_element_type=jnp.float32) + b1.astype(jnp.bfloat16)
    h_ref = jnp.maximum(h_ref, 0.0)
    ref_bf16 = jnp.dot(h_ref.astype(jnp.bfloat16), w2.T.astype(jnp.bfloat16),
                       preferred_element_type=jnp.float32) + b2.astype(jnp.bfloat16)
    assert jnp.allclose(logits, ref_bf16, atol=1e-3, rtol=1e-3)

    # Reference 2: full-f32 forward of the original module (loose check, bf16 operands).
    ref_f32 = jnp.maximum(flat @ w1.T + b1, 0.0) @ w2.T + b2
    assert jnp.allclose(logits, ref_f32, atol=5e-2, rtol=5e-2)

    print("KERNEL_OK")
</pallas_src>

<mosaic_0001>
module attributes {stable_mosaic.version = 11 : i64} {
  func.func @mlp_kernel(%arg0: i32, %arg1: memref<8x784xf32, #tpu.memory_space<vmem>>, %arg2: memref<784x128xbf16, #tpu.memory_space<vmem>>, %arg3: memref<1x128xbf16, #tpu.memory_space<vmem>>, %arg4: memref<128x128xbf16, #tpu.memory_space<vmem>>, %arg5: memref<1x128xbf16, #tpu.memory_space<vmem>>, %arg6: memref<8x128xf32, #tpu.memory_space<vmem>>) attributes {dimension_semantics = [#tpu.dimension_semantics<parallel>], iteration_bounds = array<i64: 1>, scalar_prefetch = 0 : i64, scratch_operands = 0 : i64, tpu.core_type = #tpu.core_type<tc>, window_params = [{transform_indices = @transform_0, window_bounds = array<i64: 8, 784>}, {pipeline_mode = #tpu.pipeline_mode<synchronous>, transform_indices = @transform_1, window_bounds = array<i64: 784, 128>}, {pipeline_mode = #tpu.pipeline_mode<synchronous>, transform_indices = @transform_2, window_bounds = array<i64: 1, 128>}, {pipeline_mode = #tpu.pipeline_mode<synchronous>, transform_indices = @transform_3, window_bounds = array<i64: 128, 128>}, {pipeline_mode = #tpu.pipeline_mode<synchronous>, transform_indices = @transform_4, window_bounds = array<i64: 1, 128>}, {transform_indices = @transform_5, window_bounds = array<i64: 8, 128>}]} {
    %c0 = arith.constant 0 : index
    %c0_0 = arith.constant 0 : index
    %0 = vector.load %arg1[%c0, %c0_0] : memref<8x784xf32, #tpu.memory_space<vmem>>, vector<8x784xf32>
    %1 = arith.truncf %0 : vector<8x784xf32> to vector<8x784xbf16>
    %c0_1 = arith.constant 0 : index
    %c0_2 = arith.constant 0 : index
    %2 = vector.load %arg2[%c0_1, %c0_2] : memref<784x128xbf16, #tpu.memory_space<vmem>>, vector<784x128xbf16>
    %cst = arith.constant dense<0.000000e+00> : vector<8x128xf32>
    %3 = tpu.matmul %1, %2, %cst {dimension_numbers = #tpu.dot_dimension_numbers<[1], [0], [0], [1], [0, 0, 1, 1], [], []>} : vector<8x784xbf16>, vector<784x128xbf16>, vector<8x128xf32> -> vector<8x128xf32>
    %c0_3 = arith.constant 0 : index
    %c0_4 = arith.constant 0 : index
    %4 = vector.load %arg3[%c0_3, %c0_4] : memref<1x128xbf16, #tpu.memory_space<vmem>>, vector<1x128xbf16>
    %5 = arith.extf %4 : vector<1x128xbf16> to vector<1x128xf32>
    %6 = vector.broadcast %5 : vector<1x128xf32> to vector<8x128xf32>
    %7 = arith.addf %3, %6 : vector<8x128xf32>
    %cst_5 = arith.constant 0.000000e+00 : f32
    %8 = vector.broadcast %cst_5 : f32 to vector<8x128xf32>
    %9 = arith.maximumf %7, %8 : vector<8x128xf32>
    %10 = arith.truncf %9 : vector<8x128xf32> to vector<8x128xbf16>
    %c0_6 = arith.constant 0 : index
    %c0_7 = arith.constant 0 : index
    %11 = vector.load %arg4[%c0_6, %c0_7] : memref<128x128xbf16, #tpu.memory_space<vmem>>, vector<128x128xbf16>
    %cst_8 = arith.constant dense<0.000000e+00> : vector<8x128xf32>
    %12 = tpu.matmul %10, %11, %cst_8 {dimension_numbers = #tpu.dot_dimension_numbers<[1], [0], [0], [1], [0, 0, 1, 1], [], []>} : vector<8x128xbf16>, vector<128x128xbf16>, vector<8x128xf32> -> vector<8x128xf32>
    %c0_9 = arith.constant 0 : index
    %c0_10 = arith.constant 0 : index
    %13 = vector.load %arg5[%c0_9, %c0_10] : memref<1x128xbf16, #tpu.memory_space<vmem>>, vector<1x128xbf16>
    %14 = arith.extf %13 : vector<1x128xbf16> to vector<1x128xf32>
    %15 = vector.broadcast %14 : vector<1x128xf32> to vector<8x128xf32>
    %16 = arith.addf %12, %15 : vector<8x128xf32>
    %c0_11 = arith.constant 0 : index
    %c0_12 = arith.constant 0 : index
    %17 = vector.load %arg6[%c0_11, %c0_12] : memref<8x128xf32, #tpu.memory_space<vmem>>, vector<8x128xf32>
    tpu.vector_store %arg6[%c0_11, %c0_12], %16 {strides = array<i32>} : memref<8x128xf32, #tpu.memory_space<vmem>>, vector<8x128xf32>,
    return
  }
  func.func @transform_0(%arg0: i32) -> (i32, i32) {
    %c0_i32 = arith.constant 0 : i32
    %c0_i32_0 = arith.constant 0 : i32
    return %arg0, %c0_i32 : i32, i32
  }
  func.func @transform_1(%arg0: i32) -> (i32, i32) {
    %c0_i32 = arith.constant 0 : i32
    %c0_i32_0 = arith.constant 0 : i32
    %c0_i32_1 = arith.constant 0 : i32
    return %c0_i32, %c0_i32_0 : i32, i32
  }
  func.func @transform_2(%arg0: i32) -> (i32, i32) {
    %c0_i32 = arith.constant 0 : i32
    %c0_i32_0 = arith.constant 0 : i32
    %c0_i32_1 = arith.constant 0 : i32
    return %c0_i32, %c0_i32_0 : i32, i32
  }
  func.func @transform_3(%arg0: i32) -> (i32, i32) {
    %c0_i32 = arith.constant 0 : i32
    %c0_i32_0 = arith.constant 0 : i32
    %c0_i32_1 = arith.constant 0 : i32
    return %c0_i32, %c0_i32_0 : i32, i32
  }
  func.func @transform_4(%arg0: i32) -> (i32, i32) {
    %c0_i32 = arith.constant 0 : i32
    %c0_i32_0 = arith.constant 0 : i32
    %c0_i32_1 = arith.constant 0 : i32
    return %c0_i32, %c0_i32_0 : i32, i32
  }
  func.func @transform_5(%arg0: i32) -> (i32, i32) {
    %c0_i32 = arith.constant 0 : i32
    %c0_i32_0 = arith.constant 0 : i32
    return %arg0, %c0_i32 : i32, i32
  }
}

</mosaic_0001>

<llo_original>
// kernel: tpu_custom_call.1
$region0: #{tpu_custom_call.1}
  #allocation0 [shape = 'u32[]', space=smem, size = 0x4, offset = 0x4, fixed_abs, tag = 'smem constant byte address 0x4 - core index']
  #allocation1 [shape = 'u32[144,128]{1,0:T(1,128)}', space=vmem, size = 0x12000, scoped, tag = 'internal scratch']
  %s0 = inlined_call_operand.hbm [shape: f32[2,784], index: 0, kind: input, shape index: {}]
  %s1 = inlined_call_operand.hbm [shape: bf16[784,128], index: 1, kind: input, shape index: {}]
  %s2 = inlined_call_operand.vmem [shape: bf16[1,128], index: 2, kind: input, shape index: {}]
  %s3 = inlined_call_operand.hbm [shape: bf16[128,128], index: 3, kind: input, shape index: {}]
  %s4 = inlined_call_operand.vmem [shape: bf16[1,128], index: 4, kind: input, shape index: {}]
  %s5 = inlined_call_operand.hbm [shape: f32[2,128], index: 5, kind: output, shape index: {}]
  %s6 = sld [smem:[#allocation0]]
  $region42: #{tpu_custom_call.1} parent=0
    _
  %s8 = ssub.s32 1, %s6
  %s9 = scalar_select 0, %s8, %s6
  $region1: #{tpu_custom_call.1} parent=0
    #allocation2 [shape = 'u8[28672]{0}', space=vmem, size = 0x7000, scoped, tag = 'input window, operand 0, single buffered']
    #allocation3 [shape = 's32[1]{0}', space=sflag, size = 0x4, scoped, tag = 'scoped memory for tpu_custom_call.1']
    #allocation4 [shape = 's32[1]{0}', space=sflag, size = 0x4, scoped, tag = 'scoped memory for tpu_custom_call.1']
    #allocation5 [shape = 'u8[200704]{0}', space=vmem, size = 0x31000, scoped, tag = 'input window, operand 1, single buffered']
    #allocation6 [shape = 's32[1]{0}', space=sflag, size = 0x4, scoped, tag = 'scoped memory for tpu_custom_call.1']
    #allocation7 [shape = 'u8[32768]{0}', space=vmem, size = 0x8000, scoped, tag = 'input window, operand 3, single buffered']
    #allocation8 [shape = 'u8[4096]{0}', space=vmem, size = 0x1000, scoped, tag = 'output window, operand 0, single buffered']
    %10 = vsyncpa [#allocation3], 0
    %11 = vsyncpa [#allocation6], 0
    %12 = vsyncpa [#allocation4], 0
    // Predicated region
    $region2: #{tpu_custom_call.1} parent=1 // pred_check
      _
    $region3: #{tpu_custom_call.1} parent=1 // pred_check_branch
      %14 = sbr.rel (0) target = $region5
    $region4: #{tpu_custom_call.1} parent=1 // pred_region
      %s16 = ssub.s32 896, 224
      %17 = vsyncadd [#allocation3], %s16
      %s18 = sshll.u32 [#allocation2], 4
      %s19 = int_to_ptr.vmem [resolvable:$true] %s18
      %24 = dma.hbm_to_vmem [thread:$0]  %s0, 224, %s19, [#allocation3], 224, 224, 14
    $region5: #{tpu_custom_call.1} parent=1 // pred_fallthru
      _
    // Predicated region
    $region6: #{tpu_custom_call.1} parent=1 // pred_check
      _
    $region7: #{tpu_custom_call.1} parent=1 // pred_check_branch
      %26 = sbr.rel (0) target = $region9
    $region8: #{tpu_custom_call.1} parent=1 // pred_region
      %s28 = ssub.s32 6272, 6272
      %29 = vsyncadd [#allocation6], %s28
      %s30 = sshll.u32 [#allocation5], 4
      %s31 = int_to_ptr.vmem [resolvable:$true] %s30
      %36 = dma.hbm_to_vmem [thread:$0]  %s1, 6272, %s31, [#allocation6], 64, 64, 4
    $region9: #{tpu_custom_call.1} parent=1 // pred_fallthru
      _
    // Predicated region
    $region10: #{tpu_custom_call.1} parent=1 // pred_check
      _
    $region11: #{tpu_custom_call.1} parent=1 // pred_check_branch
      %38 = sbr.rel (0) target = $region13
    $region12: #{tpu_custom_call.1} parent=1 // pred_region
      _
    $region13: #{tpu_custom_call.1} parent=1 // pred_fallthru
      _
    // Predicated region
    $region14: #{tpu_custom_call.1} parent=1 // pred_check
      _
    $region15: #{tpu_custom_call.1} parent=1 // pred_check_branch
      %40 = sbr.rel (0) target = $region17
    $region16: #{tpu_custom_call.1} parent=1 // pred_region
      %s42 = ssub.s32 1024, 1024
      %43 = vsyncadd [#allocation6], %s42
      %s44 = sshll.u32 [#allocation7], 4
      %s45 = int_to_ptr.vmem [resolvable:$true] %s44
      %50 = dma.hbm_to_vmem [thread:$0]  %s3, 1024, %s45, [#allocation6], 64, 64, 4
    $region17: #{tpu_custom_call.1} parent=1 // pred_fallthru
      _
    // Predicated region
    $region18: #{tpu_custom_call.1} parent=1 // pred_check
      _
    $region19: #{tpu_custom_call.1} parent=1 // pred_check_branch
      %52 = sbr.rel (0) target = $region21
    $region20: #{tpu_custom_call.1} parent=1 // pred_region
      _
    $region21: #{tpu_custom_call.1} parent=1 // pred_fallthru
      _
    // Predicated region
    $region22: #{tpu_custom_call.1} parent=1 // pred_check
      _
    $region23: #{tpu_custom_call.1} parent=1 // pred_check_branch
      %54 = sbr.rel (0) target = $region25
    $region24: #{tpu_custom_call.1} parent=1 // pred_region
      %55 = dma.done [#allocation3], 896
    $region25: #{tpu_custom_call.1} parent=1 // pred_fallthru
      _
    // Predicated region
    $region26: #{tpu_custom_call.1} parent=1 // pred_check
      _
    $region27: #{tpu_custom_call.1} parent=1 // pred_check_branch
      %57 = sbr.rel (0) target = $region29
    $region28: #{tpu_custom_call.1} parent=1 // pred_region
      %58 = dma.done [#allocation6], 6272
    $region29: #{tpu_custom_call.1} parent=1 // pred_fallthru
      _
    // Predicated region
    $region30: #{tpu_custom_call.1} parent=1 // pred_check
      _
    $region31: #{tpu_custom_call.1} parent=1 // pred_check_branch
      %60 = sbr.rel (0) target = $region33
    $region32: #{tpu_custom_call.1} parent=1 // pred_region
      %61 = dma.done [#allocation6], 1024
    $region33: #{tpu_custom_call.1} parent=1 // pred_fallthru
      _
    %v63 = vld [vmem:[#allocation2] sm:$0xff]
    %v64 = vld [vmem:[#allocation2 + $0x8] sm:$0x3f]
    %v65 = vld [vmem:[#allocation2 + $0xe] sm:$0xff]
    %v66 = vld [vmem:[#allocation2 + $0x16] sm:$0x3f]
    %v67 = vld [vmem:[#allocation2 + $0x1c] sm:$0xff]
    %v68 = vld [vmem:[#allocation2 + $0x24] sm:$0x3f]
    %v69 = vld [vmem:[#allocation2 + $0x2a] sm:$0xff]
    %v70 = vld [vmem:[#allocation2 + $0x32] sm:$0x3f]
    %v79 = vcombine.low %v63, %v65
    %v80 = vcombine.high %v63, %v65
    %v81 = vcombine.low %v67, %v69
    %v82 = vcombine.high %v67, %v69
    %v84 = vunpack.c.l.s4 1983009808
    %v85 = vunpack.c.0.s8 %v84
    %v86 = vlaneseq
    %v87 = vshrl.u32 %v86, 7
    %v88 = vsub.s32 %v85, %v87
    %v89 = vrot.slane %v79, %v88
    %v91 = vunpack.c.l.s4 1983009808
    %v92 = vunpack.c.0.s8 %v91
    %v93 = vlaneseq
    %v94 = vshrl.u32 %v93, 7
    %v95 = vsub.s32 %v92, %v94
    %v96 = vrot.slane %v80, %v95
    %v98 = vunpack.c.l.s4 1983009808
    %v99 = vunpack.c.0.s8 %v98
    %v100 = vlaneseq
    %v101 = vshrl.u32 %v100, 7
    %v102 = vsub.s32 %v99, %v101
    %v103 = vrot.slane %v81, %v102
    %v105 = vunpack.c.l.s4 1983009808
    %v106 = vunpack.c.0.s8 %v105
    %v107 = vlaneseq
    %v108 = vshrl.u32 %v107, 7
    %v109 = vsub.s32 %v106, %v108
    %v110 = vrot.slane %v82, %v109
    %v111 = vcombine.low %v89, %v103
    %v112 = vcombine.high %v89, %v103
    %v113 = vcombine.low %v96, %v110
    %v114 = vcombine.high %v96, %v110
    %v115 = vcombine.low %v64, %v66
    %v116 = vcombine.high %v64, %v66
    %v117 = vcombine.low %v68, %v70
    %v118 = vcombine.high %v68, %v70
    %v120 = vunpack.c.l.s4 1983009808
    %v121 = vunpack.c.0.s8 %v120
    %v122 = vlaneseq
    %v123 = vshrl.u32 %v122, 7
    %v124 = vsub.s32 %v121, %v123
    %v125 = vrot.slane %v115, %v124
    %v127 = vunpack.c.l.s4 1983009808
    %v128 = vunpack.c.0.s8 %v127
    %v129 = vlaneseq
    %v130 = vshrl.u32 %v129, 7
    %v131 = vsub.s32 %v128, %v130
    %v132 = vrot.slane %v116, %v131
    %v134 = vunpack.c.l.s4 1983009808
    %v135 = vunpack.c.0.s8 %v134
    %v136 = vlaneseq
    %v137 = vshrl.u32 %v136, 7
    %v138 = vsub.s32 %v135, %v137
    %v139 = vrot.slane %v117, %v138
    %v141 = vunpack.c.l.s4 1983009808
    %v142 = vunpack.c.0.s8 %v141
    %v143 = vlaneseq
    %v144 = vshrl.u32 %v143, 7
    %v145 = vsub.s32 %v142, %v144
    %v146 = vrot.slane %v118, %v145
    %v147 = vcombine.low %v125, %v139
    %v148 = vcombine.high %v125, %v139
    %v149 = vcombine.low %v132, %v146
    %v157 = vpack.c.bf16 %v111, %v111
    %v158 = vpack.c.bf16 %v112, %v112
    %v159 = vpack.c.bf16 %v113, %v113
    %v160 = vpack.c.bf16 %v114, %v114
    %v161 = vpack.c.bf16 %v147, %v147
    %v162 = vpack.c.bf16 %v148, %v148
    %v163 = vpack.c.bf16 %v149, %v149
    %v164 = vld [vmem:[#allocation5] sm:$0xf]
    %v165 = vld [vmem:[#allocation5 + $0x4] sm:$0xf]
    %v166 = vld [vmem:[#allocation5 + $0x8] sm:$0xf]
    %v167 = vld [vmem:[#allocation5 + $0xc] sm:$0xf]
    %v168 = vld [vmem:[#allocation5 + $0x10] sm:$0xf]
    %v169 = vld [vmem:[#allocation5 + $0x14] sm:$0xf]
    %v170 = vld [vmem:[#allocation5 + $0x18] sm:$0xf]
    %v171 = vld [vmem:[#allocation5 + $0x1c] sm:$0xf]
    %v172 = vld [vmem:[#allocation5 + $0x20] sm:$0xf]
    %v173 = vld [vmem:[#allocation5 + $0x24] sm:$0xf]
    %v174 = vld [vmem:[#allocation5 + $0x28] sm:$0xf]
    %v175 = vld [vmem:[#allocation5 + $0x2c] sm:$0xf]
    %v176 = vld [vmem:[#allocation5 + $0x30] sm:$0xf]
    %v177 = vld [vmem:[#allocation5 + $0x34] sm:$0xf]
    %v178 = vld [vmem:[#allocation5 + $0x38] sm:$0xf]
    %v179 = vld [vmem:[#allocation5 + $0x3c] sm:$0xf]
    %v180 = vld [vmem:[#allocation5 + $0x40] sm:$0xf]
    %v181 = vld [vmem:[#allocation5 + $0x44] sm:$0xf]
    %v182 = vld [vmem:[#allocation5 + $0x48] sm:$0xf]
    %v183 = vld [vmem:[#allocation5 + $0x4c] sm:$0xf]
    %v184 = vld [vmem:[#allocation5 + $0x50] sm:$0xf]
    %v185 = vld [vmem:[#allocation5 + $0x54] sm:$0xf]
    %v186 = vld [vmem:[#allocation5 + $0x58] sm:$0xf]
    %v187 = vld [vmem:[#allocation5 + $0x5c] sm:$0xf]
    %v188 = vld [vmem:[#allocation5 + $0x60] sm:$0xf]
    %v189 = vld [vmem:[#allocation5 + $0x64] sm:$0xf]
    %v190 = vld [vmem:[#allocation5 + $0x68] sm:$0xf]
    %v191 = vld [vmem:[#allocation5 + $0x6c] sm:$0xf]
    %v192 = vld [vmem:[#allocation5 + $0x70] sm:$0xf]
    %v193 = vld [vmem:[#allocation5 + $0x74] sm:$0xf]
    %v194 = vld [vmem:[#allocation5 + $0x78] sm:$0xf]
    %v195 = vld [vmem:[#allocation5 + $0x7c] sm:$0xf]
    %v196 = vld [vmem:[#allocation5 + $0x80] sm:$0xf]
    %v197 = vld [vmem:[#allocation5 + $0x84] sm:$0xf]
    %v198 = vld [vmem:[#allocation5 + $0x88] sm:$0xf]
    %v199 = vld [vmem:[#allocation5 + $0x8c] sm:$0xf]
    %v200 = vld [vmem:[#allocation5 + $0x90] sm:$0xf]
    %v201 = vld [vmem:[#allocation5 + $0x94] sm:$0xf]
    %v202 = vld [vmem:[#allocation5 + $0x98] sm:$0xf]
    %v203 = vld [vmem:[#allocation5 + $0x9c] sm:$0xf]
    %v204 = vld [vmem:[#allocation5 + $0xa0] sm:$0xf]
    %v205 = vld [vmem:[#allocation5 + $0xa4] sm:$0xf]
    %v206 = vld [vmem:[#allocation5 + $0xa8] sm:$0xf]
    %v207 = vld [vmem:[#allocation5 + $0xac] sm:$0xf]
    %v208 = vld [vmem:[#allocation5 + $0xb0] sm:$0xf]
    %v209 = vld [vmem:[#allocation5 + $0xb4] sm:$0xf]
    %v210 = vld [vmem:[#allocation5 + $0xb8] sm:$0xf]
    %v211 = vld [vmem:[#allocation5 + $0xbc] sm:$0xf]
    %v212 = vld [vmem:[#allocation5 + $0xc0] sm:$0xf]
    %v213 = vld [vmem:[#allocation5 + $0xc4] sm:$0xf]
    %v214 = vld [vmem:[#allocation5 + $0xc8] sm:$0xf]
    %v215 = vld [vmem:[#allocation5 + $0xcc] sm:$0xf]
    %v216 = vld [vmem:[#allocation5 + $0xd0] sm:$0xf]
    %v217 = vld [vmem:[#allocation5 + $0xd4] sm:$0xf]
    %v218 = vld [vmem:[#allocation5 + $0xd8] sm:$0xf]
    %v219 = vld [vmem:[#allocation5 + $0xdc] sm:$0xf]
    %v220 = vld [vmem:[#allocation5 + $0xe0] sm:$0xf]
    %v221 = vld [vmem:[#allocation5 + $0xe4] sm:$0xf]
    %v222 = vld [vmem:[#allocation5 + $0xe8] sm:$0xf]
    %v223 = vld [vmem:[#allocation5 + $0xec] sm:$0xf]
    %v224 = vld [vmem:[#allocation5 + $0xf0] sm:$0xf]
    %v225 = vld [vmem:[#allocation5 + $0xf4] sm:$0xf]
    %v226 = vld [vmem:[#allocation5 + $0xf8] sm:$0xf]
    %v227 = vld [vmem:[#allocation5 + $0xfc] sm:$0xf]
    %v228 = vld [vmem:[#allocation5 + $0x100] sm:$0xf]
    %v229 = vld [vmem:[#allocation5 + $0x104] sm:$0xf]
    %v230 = vld [vmem:[#allocation5 + $0x108] sm:$0xf]
    %v231 = vld [vmem:[#allocation5 + $0x10c] sm:$0xf]
    %v232 = vld [vmem:[#allocation5 + $0x110] sm:$0xf]
    %v233 = vld [vmem:[#allocation5 + $0x114] sm:$0xf]
    %v234 = vld [vmem:[#allocation5 + $0x118] sm:$0xf]
    %v235 = vld [vmem:[#allocation5 + $0x11c] sm:$0xf]
    %v236 = vld [vmem:[#allocation5 + $0x120] sm:$0xf]
    %v237 = vld [vmem:[#allocation5 + $0x124] sm:$0xf]
    %v238 = vld [vmem:[#allocation5 + $0x128] sm:$0xf]
    %v239 = vld [vmem:[#allocation5 + $0x12c] sm:$0xf]
    %v240 = vld [vmem:[#allocation5 + $0x130] sm:$0xf]
    %v241 = vld [vmem:[#allocation5 + $0x134] sm:$0xf]
    %v242 = vld [vmem:[#allocation5 + $0x138] sm:$0xf]
    %v243 = vld [vmem:[#allocation5 + $0x13c] sm:$0xf]
    %v244 = vld [vmem:[#allocation5 + $0x140] sm:$0xf]
    %v245 = vld [vmem:[#allocation5 + $0x144] sm:$0xf]
    %v246 = vld [vmem:[#allocation5 + $0x148] sm:$0xf]
    %v247 = vld [vmem:[#allocation5 + $0x14c] sm:$0xf]
    %v248 = vld [vmem:[#allocation5 + $0x150] sm:$0xf]
    %v249 = vld [vmem:[#allocation5 + $0x154] sm:$0xf]
    %v250 = vld [vmem:[#allocation5 + $0x158] sm:$0xf]
    %v251 = vld [vmem:[#allocation5 + $0x15c] sm:$0xf]
    %v252 = vld [vmem:[#allocation5 + $0x160] sm:$0xf]
    %v253 = vld [vmem:[#allocation5 + $0x164] sm:$0xf]
    %v254 = vld [vmem:[#allocation5 + $0x168] sm:$0xf]
    %v255 = vld [vmem:[#allocation5 + $0x16c] sm:$0xf]
    %v256 = vld [vmem:[#allocation5 + $0x170] sm:$0xf]
    %v257 = vld [vmem:[#allocation5 + $0x174] sm:$0xf]
    %v258 = vld [vmem:[#allocation5 + $0x178] sm:$0xf]
    %v259 = vld [vmem:[#allocation5 + $0x17c] sm:$0xf]
    %v260 = vld [vmem:[#allocation5 + $0x180] sm:$0xf]
    %v261 = vld [vmem:[#allocation5 + $0x184] sm:$0xf]
    %v262 = vld [vmem:[%s2] sm:$0x1]
    %v263 = vunpack.c.l.bf16 %v262
    %v264 = vlaneseq
    %v265 = vshrl.u32 %v264, 7
    %v266 = vsub.s32 0, %v265
    %v267 = vrot.slane %v263, %v266
    %v366 = vunpack.c.l.b16 %v164
    %v367 = vunpack.c.l.b16 %v165
    %v368 = vunpack.c.l.b16 %v166
    %v369 = vunpack.c.l.b16 %v167
    %v370 = vunpack.c.l.b16 %v168
    %v371 = vunpack.c.l.b16 %v169
    %v372 = vunpack.c.l.b16 %v170
    %v373 = vunpack.c.l.b16 %v171
    %v374 = vunpack.c.l.b16 %v172
    %v375 = vunpack.c.l.b16 %v173
    %v376 = vunpack.c.l.b16 %v174
    %v377 = vunpack.c.l.b16 %v175
    %v378 = vunpack.c.l.b16 %v176
    %v379 = vunpack.c.l.b16 %v177
    %v380 = vunpack.c.l.b16 %v178
    %v381 = vunpack.c.l.b16 %v179
    %v382 = vunpack.c.l.b16 %v180
    %v383 = vunpack.c.l.b16 %v181
    %v384 = vunpack.c.l.b16 %v182
    %v385 = vunpack.c.l.b16 %v183
    %v386 = vunpack.c.l.b16 %v184
    %v387 = vunpack.c.l.b16 %v185
    %v388 = vunpack.c.l.b16 %v186
    %v389 = vunpack.c.l.b16 %v187
    %v390 = vunpack.c.l.b16 %v188
    %v391 = vunpack.c.l.b16 %v189
    %v392 = vunpack.c.l.b16 %v190
    %v393 = vunpack.c.l.b16 %v191
    %v394 = vunpack.c.l.b16 %v192
    %v395 = vunpack.c.l.b16 %v193
    %v396 = vunpack.c.l.b16 %v194
    %v397 = vunpack.c.l.b16 %v195
    %v398 = vunpack.c.l.b16 %v196
    %v399 = vunpack.c.l.b16 %v197
    %v400 = vunpack.c.l.b16 %v198
    %v401 = vunpack.c.l.b16 %v199
    %v402 = vunpack.c.l.b16 %v200
    %v403 = vunpack.c.l.b16 %v201
    %v404 = vunpack.c.l.b16 %v202
    %v405 = vunpack.c.l.b16 %v203
    %v406 = vunpack.c.l.b16 %v204
    %v407 = vunpack.c.l.b16 %v205
    %v408 = vunpack.c.l.b16 %v206
    %v409 = vunpack.c.l.b16 %v207
    %v410 = vunpack.c.l.b16 %v208
    %v411 = vunpack.c.l.b16 %v209
    %v412 = vunpack.c.l.b16 %v210
    %v413 = vunpack.c.l.b16 %v211
    %v414 = vunpack.c.l.b16 %v212
    %v415 = vunpack.c.l.b16 %v213
    %v416 = vunpack.c.l.b16 %v214
    %v417 = vunpack.c.l.b16 %v215
    %v418 = vunpack.c.l.b16 %v216
    %v419 = vunpack.c.l.b16 %v217
    %v420 = vunpack.c.l.b16 %v218
    %v421 = vunpack.c.l.b16 %v219
    %v422 = vunpack.c.l.b16 %v220
    %v423 = vunpack.c.l.b16 %v221
    %v424 = vunpack.c.l.b16 %v222
    %v425 = vunpack.c.l.b16 %v223
    %v426 = vunpack.c.l.b16 %v224
    %v427 = vunpack.c.l.b16 %v225
    %v428 = vunpack.c.l.b16 %v226
    %v429 = vunpack.c.l.b16 %v227
    %v430 = vunpack.c.l.b16 %v228
    %v431 = vunpack.c.l.b16 %v229
    %v432 = vunpack.c.l.b16 %v230
    %v433 = vunpack.c.l.b16 %v231
    %v434 = vunpack.c.l.b16 %v232
    %v435 = vunpack.c.l.b16 %v233
    %v436 = vunpack.c.l.b16 %v234
    %v437 = vunpack.c.l.b16 %v235
    %v438 = vunpack.c.l.b16 %v236
    %v439 = vunpack.c.l.b16 %v237
    %v440 = vunpack.c.l.b16 %v238
    %v441 = vunpack.c.l.b16 %v239
    %v442 = vunpack.c.l.b16 %v240
    %v443 = vunpack.c.l.b16 %v241
    %v444 = vunpack.c.l.b16 %v242
    %v445 = vunpack.c.l.b16 %v243
    %v446 = vunpack.c.l.b16 %v244
    %v447 = vunpack.c.l.b16 %v245
    %v448 = vunpack.c.l.b16 %v246
    %v449 = vunpack.c.l.b16 %v247
    %v450 = vunpack.c.l.b16 %v248
    %v451 = vunpack.c.l.b16 %v249
    %v452 = vunpack.c.l.b16 %v250
    %v453 = vunpack.c.l.b16 %v251
    %v454 = vunpack.c.l.b16 %v252
    %v455 = vunpack.c.l.b16 %v253
    %v456 = vunpack.c.l.b16 %v254
    %v457 = vunpack.c.l.b16 %v255
    %v458 = vunpack.c.l.b16 %v256
    %v459 = vunpack.c.l.b16 %v257
    %v460 = vunpack.c.l.b16 %v258
    %v461 = vunpack.c.l.b16 %v259
    %v462 = vunpack.c.l.b16 %v260
    %v463 = vunpack.c.l.b16 %v261
    %v464 = vpack.c.b16 %v367, %v366
    %v465 = vpack.c.b16 %v369, %v368
    %v466 = vpack.c.b16 %v371, %v370
    %v467 = vpack.c.b16 %v373, %v372
    %v468 = vpack.c.b16 %v375, %v374
    %v469 = vpack.c.b16 %v377, %v376
    %v470 = vpack.c.b16 %v379, %v378
    %v471 = vpack.c.b16 %v381, %v380
    %v472 = vpack.c.b16 %v383, %v382
    %v473 = vpack.c.b16 %v385, %v384
    %v474 = vpack.c.b16 %v387, %v386
    %v475 = vpack.c.b16 %v389, %v388
    %v476 = vpack.c.b16 %v391, %v390
    %v477 = vpack.c.b16 %v393, %v392
    %v478 = vpack.c.b16 %v395, %v394
    %v479 = vpack.c.b16 %v397, %v396
    %v480 = vpack.c.b16 %v399, %v398
    %v481 = vpack.c.b16 %v401, %v400
    %v482 = vpack.c.b16 %v403, %v402
    %v483 = vpack.c.b16 %v405, %v404
    %v484 = vpack.c.b16 %v407, %v406
    %v485 = vpack.c.b16 %v409, %v408
    %v486 = vpack.c.b16 %v411, %v410
    %v487 = vpack.c.b16 %v413, %v412
    %v488 = vpack.c.b16 %v415, %v414
    %v489 = vpack.c.b16 %v417, %v416
    %v490 = vpack.c.b16 %v419, %v418
    %v491 = vpack.c.b16 %v421, %v420
    %v492 = vpack.c.b16 %v423, %v422
    %v493 = vpack.c.b16 %v425, %v424
    %v494 = vpack.c.b16 %v427, %v426
    %v495 = vpack.c.b16 %v429, %v428
    %v496 = vpack.c.b16 %v431, %v430
    %v497 = vpack.c.b16 %v433, %v432
    %v498 = vpack.c.b16 %v435, %v434
    %v499 = vpack.c.b16 %v437, %v436
    %v500 = vpack.c.b16 %v439, %v438
    %v501 = vpack.c.b16 %v441, %v440
    %v502 = vpack.c.b16 %v443, %v442
    %v503 = vpack.c.b16 %v445, %v444
    %v504 = vpack.c.b16 %v447, %v446
    %v505 = vpack.c.b16 %v449, %v448
    %v506 = vpack.c.b16 %v451, %v450
    %v507 = vpack.c.b16 %v453, %v452
    %v508 = vpack.c.b16 %v455, %v454
    %v509 = vpack.c.b16 %v457, %v456
    %v510 = vpack.c.b16 %v459, %v458
    %v511 = vpack.c.b16 %v461, %v460
    %v512 = vpack.c.b16 %v463, %v462
    %vm562 = vcmask 130048
    %v564 = vsel %vm562, %v163, 0
    %566 = vmatprep.subr.bf16.mxu0 0
    %567 = vmatpush1.bf16.msra.mxu0 %v464
    %568 = vmatprep.subr.bf16.mxu0 0
    %569 = vmatpush1.bf16.msra.mxu0 %v465
    %570 = vmatprep.subr.bf16.mxu0 0
    %571 = vmatpush1.bf16.msra.mxu0 %v466
    %572 = vmatprep.subr.bf16.mxu0 0
    %573 = vmatpush1.bf16.msra.mxu0 %v467
    %574 = vmatprep.subr.bf16.mxu0 0
    %575 = vmatpush1.bf16.msra.mxu0 %v468
    %576 = vmatprep.subr.bf16.mxu0 0
    %577 = vmatpush1.bf16.msra.mxu0 %v469
    %578 = vmatprep.subr.bf16.mxu0 0
    %579 = vmatpush1.bf16.msra.mxu0 %v470
    %580 = vmatprep.subr.bf16.mxu0 0
    %581 = vmatpush1.bf16.msra.mxu0 %v471
    %582 = vmatprep.subr.bf16.mxu0 0
    %583 = vmatpush1.bf16.msra.mxu0 %v472
    %584 = vmatprep.subr.bf16.mxu0 0
    %585 = vmatpush1.bf16.msra.mxu0 %v473
    %586 = vmatprep.subr.bf16.mxu0 0
    %587 = vmatpush1.bf16.msra.mxu0 %v474
    %588 = vmatprep.subr.bf16.mxu0 0
    %589 = vmatpush1.bf16.msra.mxu0 %v475
    %590 = vmatprep.subr.bf16.mxu0 0
    %591 = vmatpush1.bf16.msra.mxu0 %v476
    %592 = vmatprep.subr.bf16.mxu0 0
    %593 = vmatpush1.bf16.msra.mxu0 %v477
    %594 = vmatprep.subr.bf16.mxu0 0
    %595 = vmatpush1.bf16.msra.mxu0 %v478
    %596 = vmatprep.subr.bf16.mxu0 0
    %597 = vmatpush1.bf16.msra.mxu0 %v479
    %598 = vmatprep.mubr.bf16.mxu0 %v158
    %599 = vmatmul.mubr.bf16.gmra.mrb[0].mxu0 %v157
    %v600 = vpop.f32.mrb[0].mxu0
    %v601 = vadd.f32 %v267, %v600
    %v602 = vpop.f32.mrb[0].mxu0
    %v603 = vpop.f32.mrb[0].mxu0
    %v604 = vpop.f32.mrb[0].mxu0
    %605 = vdwg.mxu0
    %606 = vmatprep.subr.bf16.mxu0 0
    %607 = vmatpush1.bf16.msra.mxu0 %v480
    %608 = vmatprep.subr.bf16.mxu0 0
    %609 = vmatpush1.bf16.msra.mxu0 %v481
    %610 = vmatprep.subr.bf16.mxu0 0
    %611 = vmatpush1.bf16.msra.mxu0 %v482
    %612 = vmatprep.subr.bf16.mxu0 0
    %613 = vmatpush1.bf16.msra.mxu0 %v483
    %614 = vmatprep.subr.bf16.mxu0 0
    %615 = vmatpush1.bf16.msra.mxu0 %v484
    %616 = vmatprep.subr.bf16.mxu0 0
    %617 = vmatpush1.bf16.msra.mxu0 %v485
    %618 = vmatprep.subr.bf16.mxu0 0
    %619 = vmatpush1.bf16.msra.mxu0 %v486
    %620 = vmatprep.subr.bf16.mxu0 0
    %621 = vmatpush1.bf16.msra.mxu0 %v487
    %622 = vmatprep.subr.bf16.mxu0 0
    %623 = vmatpush1.bf16.msra.mxu0 %v488
    %624 = vmatprep.subr.bf16.mxu0 0
    %625 = vmatpush1.bf16.msra.mxu0 %v489
    %626 = vmatprep.subr.bf16.mxu0 0
    %627 = vmatpush1.bf16.msra.mxu0 %v490
    %628 = vmatprep.subr.bf16.mxu0 0
    %629 = vmatpush1.bf16.msra.mxu0 %v491
    %630 = vmatprep.subr.bf16.mxu0 0
    %631 = vmatpush1.bf16.msra.mxu0 %v492
    %632 = vmatprep.subr.bf16.mxu0 0
    %633 = vmatpush1.bf16.msra.mxu0 %v493
    %634 = vmatprep.subr.bf16.mxu0 0
    %635 = vmatpush1.bf16.msra.mxu0 %v494
    %636 = vmatprep.subr.bf16.mxu0 0
    %637 = vmatpush1.bf16.msra.mxu0 %v495
    %638 = vmatprep.mubr.bf16.mxu0 %v160
    %639 = vmatmul.mubr.bf16.gmra.mrb[0].mxu0 %v159
    %v640 = vpop.f32.mrb[0].mxu0
    %v641 = vadd.f32 %v601, %v640
    %v642 = vpop.f32.mrb[0].mxu0
    %v643 = vpop.f32.mrb[0].mxu0
    %v644 = vpop.f32.mrb[0].mxu0
    %645 = vdwg.mxu0
    %646 = vmatprep.subr.bf16.mxu0 0
    %647 = vmatpush1.bf16.msra.mxu0 %v496
    %648 = vmatprep.subr.bf16.mxu0 0
    %649 = vmatpush1.bf16.msra.mxu0 %v497
    %650 = vmatprep.subr.bf16.mxu0 0
    %651 = vmatpush1.bf16.msra.mxu0 %v498
    %652 = vmatprep.subr.bf16.mxu0 0
    %653 = vmatpush1.bf16.msra.mxu0 %v499
    %654 = vmatprep.subr.bf16.mxu0 0
    %655 = vmatpush1.bf16.msra.mxu0 %v500
    %656 = vmatprep.subr.bf16.mxu0 0
    %657 = vmatpush1.bf16.msra.mxu0 %v501
    %658 = vmatprep.subr.bf16.mxu0 0
    %659 = vmatpush1.bf16.msra.mxu0 %v502
    %660 = vmatprep.subr.bf16.mxu0 0
    %661 = vmatpush1.bf16.msra.mxu0 %v503
    %662 = vmatprep.subr.bf16.mxu0 0
    %663 = vmatpush1.bf16.msra.mxu0 %v504
    %664 = vmatprep.subr.bf16.mxu0 0
    %665 = vmatpush1.bf16.msra.mxu0 %v505
    %666 = vmatprep.subr.bf16.mxu0 0
    %667 = vmatpush1.bf16.msra.mxu0 %v506
    %668 = vmatprep.subr.bf16.mxu0 0
    %669 = vmatpush1.bf16.msra.mxu0 %v507
    %670 = vmatprep.subr.bf16.mxu0 0
    %671 = vmatpush1.bf16.msra.mxu0 %v508
    %672 = vmatprep.subr.bf16.mxu0 0
    %673 = vmatpush1.bf16.msra.mxu0 %v509
    %674 = vmatprep.subr.bf16.mxu0 0
    %675 = vmatpush1.bf16.msra.mxu0 %v510
    %676 = vmatprep.subr.bf16.mxu0 0
    %677 = vmatpush1.bf16.msra.mxu0 %v511
    %678 = vmatprep.mubr.bf16.mxu0 %v162
    %679 = vmatmul.mubr.bf16.gmra.mrb[0].mxu0 %v161
    %v680 = vpop.f32.mrb[0].mxu0
    %v681 = vadd.f32 %v641, %v680
    %v682 = vpop.f32.mrb[0].mxu0
    %v683 = vpop.f32.mrb[0].mxu0
    %v684 = vpop.f32.mrb[0].mxu0
    %685 = vdwg.mxu0
    %686 = vmatprep.subr.bf16.mxu0 0
    %687 = vmatpush1.bf16.msra.mxu0 %v512
    %688 = vmatprep.subr.bf16.mxu0 0
    %689 = vmatpush1.bf16.msra.mxu0 0
    %690 = vmatprep.subr.bf16.mxu0 0
    %691 = vmatpush1.bf16.msra.mxu0 0
    %692 = vmatprep.subr.bf16.mxu0 0
    %693 = vmatpush1.bf16.msra.mxu0 0
    %694 = vmatprep.subr.bf16.mxu0 0
    %695 = vmatpush1.bf16.msra.mxu0 0
    %696 = vmatprep.subr.bf16.mxu0 0
    %697 = vmatpush1.bf16.msra.mxu0 0
    %698 = vmatprep.subr.bf16.mxu0 0
    %699 = vmatpush1.bf16.msra.mxu0 0
    %700 = vmatprep.subr.bf16.mxu0 0
    %701 = vmatpush1.bf16.msra.mxu0 0
    %702 = vmatprep.subr.bf16.mxu0 0
    %703 = vmatpush1.bf16.msra.mxu0 0
    %704 = vmatprep.subr.bf16.mxu0 0
    %705 = vmatpush1.bf16.msra.mxu0 0
    %706 = vmatprep.subr.bf16.mxu0 0
    %707 = vmatpush1.bf16.msra.mxu0 0
    %708 = vmatprep.subr.bf16.mxu0 0
    %709 = vmatpush1.bf16.msra.mxu0 0
    %710 = vmatprep.subr.bf16.mxu0 0
    %711 = vmatpush1.bf16.msra.mxu0 0
    %712 = vmatprep.subr.bf16.mxu0 0
    %713 = vmatpush1.bf16.msra.mxu0 0
    %714 = vmatprep.subr.bf16.mxu0 0
    %715 = vmatpush1.bf16.msra.mxu0 0
    %716 = vmatprep.subr.bf16.mxu0 0
    %717 = vmatpush1.bf16.msra.mxu0 0
    %718 = vmatprep.mubr.bf16.mxu0 0
    %719 = vmatmul.mubr.bf16.gmra.mrb[0].mxu0 %v564
    %v720 = vpop.f32.mrb[0].mxu0
    %v721 = vadd.f32 %v681, %v720
    %v722 = vpop.f32.mrb[0].mxu0
    %v723 = vpop.f32.mrb[0].mxu0
    %v724 = vpop.f32.mrb[0].mxu0
    %725 = vdwg.mxu0
    %v726 = vmax.f32 %v721, 0.0
    %v727 = vpack.c.bf16 %v726, %v726
    %v728 = vld [vmem:[#allocation7] sm:$0xf]
    %v729 = vld [vmem:[#allocation7 + $0x4] sm:$0xf]
    %v730 = vld [vmem:[#allocation7 + $0x8] sm:$0xf]
    %v731 = vld [vmem:[#allocation7 + $0xc] sm:$0xf]
    %v732 = vld [vmem:[#allocation7 + $0x10] sm:$0xf]
    %v733 = vld [vmem:[#allocation7 + $0x14] sm:$0xf]
    %v734 = vld [vmem:[#allocation7 + $0x18] sm:$0xf]
    %v735 = vld [vmem:[#allocation7 + $0x1c] sm:$0xf]
    %v736 = vld [vmem:[#allocation7 + $0x20] sm:$0xf]
    %v737 = vld [vmem:[#allocation7 + $0x24] sm:$0xf]
    %v738 = vld [vmem:[#allocation7 + $0x28] sm:$0xf]
    %v739 = vld [vmem:[#allocation7 + $0x2c] sm:$0xf]
    %v740 = vld [vmem:[#allocation7 + $0x30] sm:$0xf]
    %v741 = vld [vmem:[#allocation7 + $0x34] sm:$0xf]
    %v742 = vld [vmem:[#allocation7 + $0x38] sm:$0xf]
    %v743 = vld [vmem:[#allocation7 + $0x3c] sm:$0xf]
    %v744 = vld [vmem:[%s4] sm:$0x1]
    %v745 = vunpack.c.l.bf16 %v744
    %v746 = vlaneseq
    %v747 = vshrl.u32 %v746, 7
    %v748 = vsub.s32 0, %v747
    %v749 = vrot.slane %v745, %v748
    %v766 = vunpack.c.l.b16 %v728
    %v767 = vunpack.c.l.b16 %v729
    %v768 = vunpack.c.l.b16 %v730
    %v769 = vunpack.c.l.b16 %v731
    %v770 = vunpack.c.l.b16 %v732
    %v771 = vunpack.c.l.b16 %v733
    %v772 = vunpack.c.l.b16 %v734
    %v773 = vunpack.c.l.b16 %v735
    %v774 = vunpack.c.l.b16 %v736
    %v775 = vunpack.c.l.b16 %v737
    %v776 = vunpack.c.l.b16 %v738
    %v777 = vunpack.c.l.b16 %v739
    %v778 = vunpack.c.l.b16 %v740
    %v779 = vunpack.c.l.b16 %v741
    %v780 = vunpack.c.l.b16 %v742
    %v781 = vunpack.c.l.b16 %v743
    %v782 = vpack.c.b16 %v767, %v766
    %v783 = vpack.c.b16 %v769, %v768
    %v784 = vpack.c.b16 %v771, %v770
    %v785 = vpack.c.b16 %v773, %v772
    %v786 = vpack.c.b16 %v775, %v774
    %v787 = vpack.c.b16 %v777, %v776
    %v788 = vpack.c.b16 %v779, %v778
    %v789 = vpack.c.b16 %v781, %v780
    %798 = vmatprep.subr.bf16.mxu0 0
    %799 = vmatpush1.bf16.msra.mxu0 %v782
    %800 = vmatprep.subr.bf16.mxu0 0
    %801 = vmatpush1.bf16.msra.mxu0 %v783
    %802 = vmatprep.subr.bf16.mxu0 0
    %803 = vmatpush1.bf16.msra.mxu0 %v784
    %804 = vmatprep.subr.bf16.mxu0 0
    %805 = vmatpush1.bf16.msra.mxu0 %v785
    %806 = vmatprep.subr.bf16.mxu0 0
    %807 = vmatpush1.bf16.msra.mxu0 %v786
    %808 = vmatprep.subr.bf16.mxu0 0
    %809 = vmatpush1.bf16.msra.mxu0 %v787
    %810 = vmatprep.subr.bf16.mxu0 0
    %811 = vmatpush1.bf16.msra.mxu0 %v788
    %812 = vmatprep.subr.bf16.mxu0 0
    %813 = vmatpush1.bf16.msra.mxu0 %v789
    %814 = vmatprep.subr.bf16.mxu0 0
    %815 = vmatpush1.bf16.msra.mxu0 0
    %816 = vmatprep.subr.bf16.mxu0 0
    %817 = vmatpush1.bf16.msra.mxu0 0
    %818 = vmatprep.subr.bf16.mxu0 0
    %819 = vmatpush1.bf16.msra.mxu0 0
    %820 = vmatprep.subr.bf16.mxu0 0
    %821 = vmatpush1.bf16.msra.mxu0 0
    %822 = vmatprep.subr.bf16.mxu0 0
    %823 = vmatpush1.bf16.msra.mxu0 0
    %824 = vmatprep.subr.bf16.mxu0 0
    %825 = vmatpush1.bf16.msra.mxu0 0
    %826 = vmatprep.subr.bf16.mxu0 0
    %827 = vmatpush1.bf16.msra.mxu0 0
    %828 = vmatprep.subr.bf16.mxu0 0
    %829 = vmatpush1.bf16.msra.mxu0 0
    %830 = vmatprep.mubr.bf16.mxu0 0
    %831 = vmatmul.mubr.bf16.gmra.mrb[0].mxu0 %v727
    %v832 = vpop.f32.mrb[0].mxu0
    %v833 = vadd.f32 %v749, %v832
    %v834 = vpop.f32.mrb[0].mxu0
    %v835 = vpop.f32.mrb[0].mxu0
    %v836 = vpop.f32.mrb[0].mxu0
    %837 = vdwg.mxu0
    %838 = vst [vmem:[#allocation8] sm:$0xff] %v833
    // Predicated region
    $region34: #{tpu_custom_call.1} parent=1 // pred_check
      _
    $region35: #{tpu_custom_call.1} parent=1 // pred_check_branch
      %840 = sbr.rel (0) target = $region37
    $region36: #{tpu_custom_call.1} parent=1 // pred_region
      %s842 = ssub.s32 128, 32
      %843 = vsyncadd [#allocation4], %s842
      %s844 = sshll.u32 [#allocation8], 4
      %s845 = int_to_ptr.vmem [resolvable:$true] %s844
      %850 = dma.vmem_to_hbm [thread:$0]  %s845, 32, %s5, [#allocation4], 32, 32, 2
    $region37: #{tpu_custom_call.1} parent=1 // pred_fallthru
      _
    // Predicated region
    $region38: #{tpu_custom_call.1} parent=1 // pred_check
      _
    $region39: #{tpu_custom_call.1} parent=1 // pred_check_branch
      %852 = sbr.rel (0) target = $region41
    $region40: #{tpu_custom_call.1} parent=1 // pred_region
      %853 = dma.done [#allocation4], 128
    $region41: #{tpu_custom_call.1} parent=1 // pred_fallthru
      _
    %854 = vsyncpa [#allocation3], 1
    %855 = vsyncpa [#allocation6], 1
    %856 = vsyncpa [#allocation4], 1

</llo_original>
